<compile_context>
chip_gen: v5e
topology: v5e:2x2
jax: 0.10.0
libtpu: 0.0.40
codegen_flags: <defaults>
</compile_context>

<pallas_src>
import jax
import jax.numpy as jnp
from jax.experimental import pallas as pl
from jax.experimental.pallas import tpu as pltpu

_LANE = 128  # TPU lane width (fast axis)


def _gating_kernel(params_ref, x_ref, o_ref):
    # params_ref: SMEM f32[2] -> [alpha, alpha*beta]  (shift precomputed)
    # x_ref / o_ref: VMEM tile of the relness matrix
    alpha = params_ref[0]
    shift = params_ref[1]
    y = alpha * x_ref[...].astype(jnp.float32) - shift
    o_ref[...] = jnp.clip(y, 0.0, 1.0).astype(o_ref.dtype)


def learnable_relatedness_gating(relness, alpha, beta, *,
                                 tile_budget_bytes=4 * 1024 * 1024,
                                 min_pallas_elements=1 << 20,
                                 force_pallas=False):
    """clamp(alpha * relness - alpha * beta, 0, 1) with fp32 parameter math."""
    orig_shape = relness.shape
    dtype = relness.dtype
    total = int(relness.size)

    alpha32 = jnp.asarray(alpha, jnp.float32).reshape(())
    beta32 = jnp.asarray(beta, jnp.float32).reshape(())

    # Small / mid-size inputs: a standalone pallas_call costs more than it
    # saves -- let XLA fuse the two elementwise ops into neighboring work.
    if total == 0 or (total < min_pallas_elements and not force_pallas):
        y = alpha32 * relness.astype(jnp.float32) - alpha32 * beta32
        return jnp.clip(y, 0.0, 1.0).astype(dtype)

    # fp32 params in SMEM; shift = alpha*beta precomputed once outside.
    params = jnp.stack([alpha32, alpha32 * beta32])

    # Collapse to 2-D (M, N) with N = original last dim.  No pad, no slice.
    if relness.ndim >= 2:
        N = orig_shape[-1]
        M = total // N
    else:
        N = total
        M = 1
    x2d = relness.reshape(M, N)

    itemsize = jnp.dtype(dtype).itemsize
    # dtype-native sublane packing: f32 -> 8 rows, bf16 -> 16, int8/fp8 -> 32.
    sub_mult = 8 * max(1, 4 // itemsize)

    # Column tiling only if a minimum-height row stripe overflows the tile
    # budget (never for realistic relness score matrices).
    if sub_mult * N * itemsize <= tile_budget_bytes:
        block_n = N                                   # full dim -> always legal
    else:
        block_n = max(
            _LANE,
            ((tile_budget_bytes // (sub_mult * itemsize)) // _LANE) * _LANE)

    # Rows per tile from the budget.  If the whole array fits one tile, take
    # it in a single step (block_m == M is legal even when M % 8 != 0);
    # otherwise round down to the dtype packing granularity and let the last
    # grid block be ragged.
    budget_rows = max(1, tile_budget_bytes // (block_n * itemsize))
    if budget_rows >= M:
        block_m = M
    else:
        block_m = max(sub_mult, (budget_rows // sub_mult) * sub_mult)

    grid = (pl.cdiv(M, block_m), pl.cdiv(N, block_n))

    out2d = pl.pallas_call(
        _gating_kernel,
        out_shape=jax.ShapeDtypeStruct((M, N), dtype),
        grid=grid,
        in_specs=[
            pl.BlockSpec(memory_space=pltpu.SMEM),                   # [alpha, alpha*beta]
            pl.BlockSpec((block_m, block_n), lambda i, j: (i, j)),   # relness tile
        ],
        out_specs=pl.BlockSpec((block_m, block_n), lambda i, j: (i, j)),
        compiler_params=pltpu.CompilerParams(
            dimension_semantics=("parallel", "parallel"),
            # 4 MiB tiles double-buffered (in+out) ~= 16 MiB; 32 MiB keeps
            # headroom and stays under v7x's 64 MiB physical VMEM.
            vmem_limit_bytes=32 * 1024 * 1024,
        ),
    )(params, x2d)

    return out2d.reshape(orig_shape)


def _reference(relness, alpha, beta):
    a = jnp.asarray(alpha, jnp.float32)
    b = jnp.asarray(beta, jnp.float32)
    y = a * relness.astype(jnp.float32) - a * b
    return jnp.clip(y, 0.0, 1.0).astype(relness.dtype)


if __name__ == "__main__":
    # Stand-in for cfg.MODEL.ROI_RELATION_HEAD.BGNN_MODULE.LEARNABLE_SCALING_WEIGHT
    alpha = jnp.float32(1.3)   # learnable parameter in the original module
    beta = jnp.float32(0.33)   # frozen parameter in the original module

    key = jax.random.PRNGKey(0)
    k1, k2, k3 = jax.random.split(key, 3)

    # 1) Typical relness score matrix with a non-(8,128)-aligned shape:
    #    single full-array block (block last dims equal full dims).
    relness = jax.random.uniform(k1, (300, 151), dtype=jnp.float32)
    out = jax.block_until_ready(
        learnable_relatedness_gating(relness, alpha, beta, force_pallas=True))
    ref = _reference(relness, alpha, beta)
    assert out.shape == relness.shape and out.dtype == relness.dtype
    assert jnp.allclose(out, ref, atol=1e-6), "f32 mismatch vs reference"

    # 2) Ragged multi-step grid (tiny tile budget forces row tiling that does
    #    not divide M evenly) -- still no pad/slice copies.
    relness2 = jax.random.uniform(k2, (333, 151), dtype=jnp.float32)
    out2 = jax.block_until_ready(
        learnable_relatedness_gating(relness2, alpha, beta,
                                     tile_budget_bytes=64 * 1024,
                                     force_pallas=True))
    assert jnp.allclose(out2, _reference(relness2, alpha, beta), atol=1e-6), \
        "ragged-grid mismatch vs reference"

    # 3) bf16 input exercises the dtype-aware sublane granularity path.
    relness3 = jax.random.uniform(k3, (256, 160), dtype=jnp.float32).astype(jnp.bfloat16)
    out3 = jax.block_until_ready(
        learnable_relatedness_gating(relness3, alpha, beta, force_pallas=True))
    assert out3.dtype == jnp.bfloat16
    assert jnp.allclose(out3.astype(jnp.float32),
                        _reference(relness3, alpha, beta).astype(jnp.float32),
                        atol=1e-2), "bf16 mismatch vs reference"

    print("KERNEL_OK")
</pallas_src>

<mosaic_0001>
module attributes {stable_mosaic.version = 11 : i64} {
  func.func @_gating_kernel(%arg0: i32, %arg1: i32, %arg2: memref<2xf32, #tpu.memory_space<smem>>, %arg3: memref<300x151xf32, #tpu.memory_space<vmem>>, %arg4: memref<300x151xf32, #tpu.memory_space<vmem>>) attributes {dimension_semantics = [#tpu.dimension_semantics<parallel>, #tpu.dimension_semantics<parallel>], iteration_bounds = array<i64: 1, 1>, scalar_prefetch = 0 : i64, scratch_operands = 0 : i64, tpu.core_type = #tpu.core_type<tc>, window_params = [{transform_indices = @transform_0, window_bounds = array<i64: 2>}, {transform_indices = @transform_1, window_bounds = array<i64: 300, 151>}, {transform_indices = @transform_2, window_bounds = array<i64: 300, 151>}]} {
    %c0 = arith.constant 0 : index
    %0 = memref.load %arg2[%c0] : memref<2xf32, #tpu.memory_space<smem>>
    %c1 = arith.constant 1 : index
    %1 = memref.load %arg2[%c1] : memref<2xf32, #tpu.memory_space<smem>>
    %c0_0 = arith.constant 0 : index
    %c0_1 = arith.constant 0 : index
    %2 = vector.load %arg3[%c0_0, %c0_1] : memref<300x151xf32, #tpu.memory_space<vmem>>, vector<300x151xf32>
    %3 = vector.broadcast %0 : f32 to vector<300x151xf32>
    %4 = arith.mulf %3, %2 : vector<300x151xf32>
    %5 = vector.broadcast %1 : f32 to vector<300x151xf32>
    %6 = arith.subf %4, %5 : vector<300x151xf32>
    %cst = arith.constant 0.000000e+00 : f32
    %cst_2 = arith.constant 1.000000e+00 : f32
    %7 = vector.broadcast %cst : f32 to vector<300x151xf32>
    %8 = arith.maximumf %7, %6 : vector<300x151xf32>
    %9 = vector.broadcast %cst_2 : f32 to vector<300x151xf32>
    %10 = arith.minimumf %9, %8 : vector<300x151xf32>
    %c0_3 = arith.constant 0 : index
    %c0_4 = arith.constant 0 : index
    %11 = vector.load %arg4[%c0_3, %c0_4] : memref<300x151xf32, #tpu.memory_space<vmem>>, vector<300x151xf32>
    tpu.vector_store %arg4[%c0_3, %c0_4], %10 {strides = array<i32>} : memref<300x151xf32, #tpu.memory_space<vmem>>, vector<300x151xf32>,
    return
  }
  func.func @transform_0(%arg0: i32, %arg1: i32) -> i32 {
    %c0_i32 = arith.constant 0 : i32
    %c0_i32_0 = arith.constant 0 : i32
    return %c0_i32 : i32
  }
  func.func @transform_1(%arg0: i32, %arg1: i32) -> (i32, i32) {
    %c0_i32 = arith.constant 0 : i32
    return %arg0, %arg1 : i32, i32
  }
  func.func @transform_2(%arg0: i32, %arg1: i32) -> (i32, i32) {
    %c0_i32 = arith.constant 0 : i32
    return %arg0, %arg1 : i32, i32
  }
}

</mosaic_0001>

<llo_original>
// kernel: tpu_custom_call.1
$region0: #{tpu_custom_call.1}
  #allocation0 [shape = 'u32[]', space=smem, size = 0x4, offset = 0x4, fixed_abs, tag = 'smem constant byte address 0x4 - core index']
  #allocation1 [shape = 'u32[72,128]{1,0:T(1,128)}', space=vmem, size = 0x9000, scoped, tag = 'internal scratch']
  %s0 = inlined_call_operand.vmem [shape: f32[2], index: 0, kind: input, shape index: {}]
  %s1 = inlined_call_operand.vmem [shape: f32[300,151], index: 1, kind: input, shape index: {}]
  %s2 = inlined_call_operand.vmem [shape: f32[300,151], index: 2, kind: output, shape index: {}]
  %s3 = sld [smem:[#allocation0]]
  $region22: #{tpu_custom_call.1} parent=0
    _
  %s5 = ssub.s32 1, %s3
  %s6 = scalar_select 0, %s5, %s3
  $region1: #{tpu_custom_call.1} parent=0
    #allocation2 [shape = 'u8[512]{0}', space=smem, size = 0x200, scoped, tag = 'input window, operand 0, single buffered']
    #allocation3 [shape = 's32[1]{0}', space=sflag, size = 0x4, scoped, tag = 'scoped memory for tpu_custom_call.1']
    %7 = vsyncpa [#allocation3], 0
    // Predicated region
    $region2: #{tpu_custom_call.1} parent=1 // pred_check
      _
    $region3: #{tpu_custom_call.1} parent=1 // pred_check_branch
      %9 = sbr.rel (0) target = $region5
    $region4: #{tpu_custom_call.1} parent=1 // pred_region
      %11 = vsyncadd [#allocation3], 0
      %s13 = sshll.u32 %s0, 4
      %s14 = int_to_ptr.vmem [resolvable:$true] %s13
      %16 = dma.vmem_to_smem %s14, 16, [#allocation2], [#allocation3]
    $region5: #{tpu_custom_call.1} parent=1 // pred_fallthru
      _
    // Predicated region
    $region6: #{tpu_custom_call.1} parent=1 // pred_check
      _
    $region7: #{tpu_custom_call.1} parent=1 // pred_check_branch
      %18 = sbr.rel (0) target = $region9
    $region8: #{tpu_custom_call.1} parent=1 // pred_region
      _
    $region9: #{tpu_custom_call.1} parent=1 // pred_fallthru
      _
    // Predicated region
    $region10: #{tpu_custom_call.1} parent=1 // pred_check
      _
    $region11: #{tpu_custom_call.1} parent=1 // pred_check_branch
      %20 = sbr.rel (0) target = $region13
    $region12: #{tpu_custom_call.1} parent=1 // pred_region
      %22 = dma.done [#allocation3], 16
    $region13: #{tpu_custom_call.1} parent=1 // pred_fallthru
      _
    %23 = sfence
    %s24 = sld [smem:[#allocation2]]
    %s25 = sld [smem:[#allocation2 + $0x1]]
    %v26 = vld [vmem:[%s1] sm:$0xff]
    %v27 = vld [vmem:[%s1 + $0x8] sm:$0xff]
    %v28 = vld [vmem:[%s1 + $0x10] sm:$0xff]
    %v29 = vld [vmem:[%s1 + $0x18] sm:$0xff]
    %v30 = vld [vmem:[%s1 + $0x20] sm:$0xff]
    %v31 = vld [vmem:[%s1 + $0x28] sm:$0xff]
    %v32 = vld [vmem:[%s1 + $0x30] sm:$0xff]
    %v33 = vld [vmem:[%s1 + $0x38] sm:$0xff]
    %v34 = vld [vmem:[%s1 + $0x40] sm:$0xff]
    %v35 = vld [vmem:[%s1 + $0x48] sm:$0xff]
    %v36 = vld [vmem:[%s1 + $0x50] sm:$0xff]
    %v37 = vld [vmem:[%s1 + $0x58] sm:$0xff]
    %v38 = vld [vmem:[%s1 + $0x60] sm:$0xff]
    %v39 = vld [vmem:[%s1 + $0x68] sm:$0xff]
    %v40 = vld [vmem:[%s1 + $0x70] sm:$0xff]
    %v41 = vld [vmem:[%s1 + $0x78] sm:$0xff]
    %v42 = vld [vmem:[%s1 + $0x80] sm:$0xff]
    %v43 = vld [vmem:[%s1 + $0x88] sm:$0xff]
    %v44 = vld [vmem:[%s1 + $0x90] sm:$0xff]
    %v45 = vld [vmem:[%s1 + $0x98] sm:$0xff]
    %v46 = vld [vmem:[%s1 + $0xa0] sm:$0xff]
    %v47 = vld [vmem:[%s1 + $0xa8] sm:$0xff]
    %v48 = vld [vmem:[%s1 + $0xb0] sm:$0xff]
    %v49 = vld [vmem:[%s1 + $0xb8] sm:$0xff]
    %v50 = vld [vmem:[%s1 + $0xc0] sm:$0xff]
    %v51 = vld [vmem:[%s1 + $0xc8] sm:$0xff]
    %v52 = vld [vmem:[%s1 + $0xd0] sm:$0xff]
    %v53 = vld [vmem:[%s1 + $0xd8] sm:$0xff]
    %v54 = vld [vmem:[%s1 + $0xe0] sm:$0xff]
    %v55 = vld [vmem:[%s1 + $0xe8] sm:$0xff]
    %v56 = vld [vmem:[%s1 + $0xf0] sm:$0xff]
    %v57 = vld [vmem:[%s1 + $0xf8] sm:$0xff]
    %v58 = vld [vmem:[%s1 + $0x100] sm:$0xff]
    %v59 = vld [vmem:[%s1 + $0x108] sm:$0xff]
    %v60 = vld [vmem:[%s1 + $0x110] sm:$0xff]
    %v61 = vld [vmem:[%s1 + $0x118] sm:$0xff]
    %v62 = vld [vmem:[%s1 + $0x120] sm:$0xff]
    %v63 = vld [vmem:[%s1 + $0x128] sm:$0xff]
    %v64 = vld [vmem:[%s1 + $0x130] sm:$0xff]
    %v65 = vld [vmem:[%s1 + $0x138] sm:$0xff]
    %v66 = vld [vmem:[%s1 + $0x140] sm:$0xff]
    %v67 = vld [vmem:[%s1 + $0x148] sm:$0xff]
    %v68 = vld [vmem:[%s1 + $0x150] sm:$0xff]
    %v69 = vld [vmem:[%s1 + $0x158] sm:$0xff]
    %v70 = vld [vmem:[%s1 + $0x160] sm:$0xff]
    %v71 = vld [vmem:[%s1 + $0x168] sm:$0xff]
    %v72 = vld [vmem:[%s1 + $0x170] sm:$0xff]
    %v73 = vld [vmem:[%s1 + $0x178] sm:$0xff]
    %v74 = vld [vmem:[%s1 + $0x180] sm:$0xff]
    %v75 = vld [vmem:[%s1 + $0x188] sm:$0xff]
    %v76 = vld [vmem:[%s1 + $0x190] sm:$0xff]
    %v77 = vld [vmem:[%s1 + $0x198] sm:$0xff]
    %v78 = vld [vmem:[%s1 + $0x1a0] sm:$0xff]
    %v79 = vld [vmem:[%s1 + $0x1a8] sm:$0xff]
    %v80 = vld [vmem:[%s1 + $0x1b0] sm:$0xff]
    %v81 = vld [vmem:[%s1 + $0x1b8] sm:$0xff]
    %v82 = vld [vmem:[%s1 + $0x1c0] sm:$0xff]
    %v83 = vld [vmem:[%s1 + $0x1c8] sm:$0xff]
    %v84 = vld [vmem:[%s1 + $0x1d0] sm:$0xff]
    %v85 = vld [vmem:[%s1 + $0x1d8] sm:$0xff]
    %v86 = vld [vmem:[%s1 + $0x1e0] sm:$0xff]
    %v87 = vld [vmem:[%s1 + $0x1e8] sm:$0xff]
    %v88 = vld [vmem:[%s1 + $0x1f0] sm:$0xff]
    %v89 = vld [vmem:[%s1 + $0x1f8] sm:$0xff]
    %v90 = vld [vmem:[%s1 + $0x200] sm:$0xff]
    %v91 = vld [vmem:[%s1 + $0x208] sm:$0xff]
    %v92 = vld [vmem:[%s1 + $0x210] sm:$0xff]
    %v93 = vld [vmem:[%s1 + $0x218] sm:$0xff]
    %v94 = vld [vmem:[%s1 + $0x220] sm:$0xff]
    %v95 = vld [vmem:[%s1 + $0x228] sm:$0xff]
    %v96 = vld [vmem:[%s1 + $0x230] sm:$0xff]
    %v97 = vld [vmem:[%s1 + $0x238] sm:$0xff]
    %v98 = vld [vmem:[%s1 + $0x240] sm:$0xff]
    %v99 = vld [vmem:[%s1 + $0x248] sm:$0xff]
    %v100 = vld [vmem:[%s1 + $0x250] sm:$0xf]
    %v101 = vld [vmem:[%s1 + $0x258] sm:$0xf]
    %v102 = vstv %s24
    %v103 = vmul.f32 %v102, %v26
    %v104 = vmul.f32 %v102, %v27
    %v105 = vmul.f32 %v102, %v28
    %v106 = vmul.f32 %v102, %v29
    %v107 = vmul.f32 %v102, %v30
    %v108 = vmul.f32 %v102, %v31
    %v109 = vmul.f32 %v102, %v32
    %v110 = vmul.f32 %v102, %v33
    %v111 = vmul.f32 %v102, %v34
    %v112 = vmul.f32 %v102, %v35
    %v113 = vmul.f32 %v102, %v36
    %v114 = vmul.f32 %v102, %v37
    %v115 = vmul.f32 %v102, %v38
    %v116 = vmul.f32 %v102, %v39
    %v117 = vmul.f32 %v102, %v40
    %v118 = vmul.f32 %v102, %v41
    %v119 = vmul.f32 %v102, %v42
    %v120 = vmul.f32 %v102, %v43
    %v121 = vmul.f32 %v102, %v44
    %v122 = vmul.f32 %v102, %v45
    %v123 = vmul.f32 %v102, %v46
    %v124 = vmul.f32 %v102, %v47
    %v125 = vmul.f32 %v102, %v48
    %v126 = vmul.f32 %v102, %v49
    %v127 = vmul.f32 %v102, %v50
    %v128 = vmul.f32 %v102, %v51
    %v129 = vmul.f32 %v102, %v52
    %v130 = vmul.f32 %v102, %v53
    %v131 = vmul.f32 %v102, %v54
    %v132 = vmul.f32 %v102, %v55
    %v133 = vmul.f32 %v102, %v56
    %v134 = vmul.f32 %v102, %v57
    %v135 = vmul.f32 %v102, %v58
    %v136 = vmul.f32 %v102, %v59
    %v137 = vmul.f32 %v102, %v60
    %v138 = vmul.f32 %v102, %v61
    %v139 = vmul.f32 %v102, %v62
    %v140 = vmul.f32 %v102, %v63
    %v141 = vmul.f32 %v102, %v64
    %v142 = vmul.f32 %v102, %v65
    %v143 = vmul.f32 %v102, %v66
    %v144 = vmul.f32 %v102, %v67
    %v145 = vmul.f32 %v102, %v68
    %v146 = vmul.f32 %v102, %v69
    %v147 = vmul.f32 %v102, %v70
    %v148 = vmul.f32 %v102, %v71
    %v149 = vmul.f32 %v102, %v72
    %v150 = vmul.f32 %v102, %v73
    %v151 = vmul.f32 %v102, %v74
    %v152 = vmul.f32 %v102, %v75
    %v153 = vmul.f32 %v102, %v76
    %v154 = vmul.f32 %v102, %v77
    %v155 = vmul.f32 %v102, %v78
    %v156 = vmul.f32 %v102, %v79
    %v157 = vmul.f32 %v102, %v80
    %v158 = vmul.f32 %v102, %v81
    %v159 = vmul.f32 %v102, %v82
    %v160 = vmul.f32 %v102, %v83
    %v161 = vmul.f32 %v102, %v84
    %v162 = vmul.f32 %v102, %v85
    %v163 = vmul.f32 %v102, %v86
    %v164 = vmul.f32 %v102, %v87
    %v165 = vmul.f32 %v102, %v88
    %v166 = vmul.f32 %v102, %v89
    %v167 = vmul.f32 %v102, %v90
    %v168 = vmul.f32 %v102, %v91
    %v169 = vmul.f32 %v102, %v92
    %v170 = vmul.f32 %v102, %v93
    %v171 = vmul.f32 %v102, %v94
    %v172 = vmul.f32 %v102, %v95
    %v173 = vmul.f32 %v102, %v96
    %v174 = vmul.f32 %v102, %v97
    %v175 = vmul.f32 %v102, %v98
    %v176 = vmul.f32 %v102, %v99
    %v177 = vmul.f32 %v102, %v100
    %v178 = vmul.f32 %v102, %v101
    %v179 = vstv %s25
    %v180 = vsub.f32 %v103, %v179
    %v181 = vsub.f32 %v104, %v179
    %v182 = vsub.f32 %v105, %v179
    %v183 = vsub.f32 %v106, %v179
    %v184 = vsub.f32 %v107, %v179
    %v185 = vsub.f32 %v108, %v179
    %v186 = vsub.f32 %v109, %v179
    %v187 = vsub.f32 %v110, %v179
    %v188 = vsub.f32 %v111, %v179
    %v189 = vsub.f32 %v112, %v179
    %v190 = vsub.f32 %v113, %v179
    %v191 = vsub.f32 %v114, %v179
    %v192 = vsub.f32 %v115, %v179
    %v193 = vsub.f32 %v116, %v179
    %v194 = vsub.f32 %v117, %v179
    %v195 = vsub.f32 %v118, %v179
    %v196 = vsub.f32 %v119, %v179
    %v197 = vsub.f32 %v120, %v179
    %v198 = vsub.f32 %v121, %v179
    %v199 = vsub.f32 %v122, %v179
    %v200 = vsub.f32 %v123, %v179
    %v201 = vsub.f32 %v124, %v179
    %v202 = vsub.f32 %v125, %v179
    %v203 = vsub.f32 %v126, %v179
    %v204 = vsub.f32 %v127, %v179
    %v205 = vsub.f32 %v128, %v179
    %v206 = vsub.f32 %v129, %v179
    %v207 = vsub.f32 %v130, %v179
    %v208 = vsub.f32 %v131, %v179
    %v209 = vsub.f32 %v132, %v179
    %v210 = vsub.f32 %v133, %v179
    %v211 = vsub.f32 %v134, %v179
    %v212 = vsub.f32 %v135, %v179
    %v213 = vsub.f32 %v136, %v179
    %v214 = vsub.f32 %v137, %v179
    %v215 = vsub.f32 %v138, %v179
    %v216 = vsub.f32 %v139, %v179
    %v217 = vsub.f32 %v140, %v179
    %v218 = vsub.f32 %v141, %v179
    %v219 = vsub.f32 %v142, %v179
    %v220 = vsub.f32 %v143, %v179
    %v221 = vsub.f32 %v144, %v179
    %v222 = vsub.f32 %v145, %v179
    %v223 = vsub.f32 %v146, %v179
    %v224 = vsub.f32 %v147, %v179
    %v225 = vsub.f32 %v148, %v179
    %v226 = vsub.f32 %v149, %v179
    %v227 = vsub.f32 %v150, %v179
    %v228 = vsub.f32 %v151, %v179
    %v229 = vsub.f32 %v152, %v179
    %v230 = vsub.f32 %v153, %v179
    %v231 = vsub.f32 %v154, %v179
    %v232 = vsub.f32 %v155, %v179
    %v233 = vsub.f32 %v156, %v179
    %v234 = vsub.f32 %v157, %v179
    %v235 = vsub.f32 %v158, %v179
    %v236 = vsub.f32 %v159, %v179
    %v237 = vsub.f32 %v160, %v179
    %v238 = vsub.f32 %v161, %v179
    %v239 = vsub.f32 %v162, %v179
    %v240 = vsub.f32 %v163, %v179
    %v241 = vsub.f32 %v164, %v179
    %v242 = vsub.f32 %v165, %v179
    %v243 = vsub.f32 %v166, %v179
    %v244 = vsub.f32 %v167, %v179
    %v245 = vsub.f32 %v168, %v179
    %v246 = vsub.f32 %v169, %v179
    %v247 = vsub.f32 %v170, %v179
    %v248 = vsub.f32 %v171, %v179
    %v249 = vsub.f32 %v172, %v179
    %v250 = vsub.f32 %v173, %v179
    %v251 = vsub.f32 %v174, %v179
    %v252 = vsub.f32 %v175, %v179
    %v253 = vsub.f32 %v176, %v179
    %v254 = vsub.f32 %v177, %v179
    %v255 = vsub.f32 %v178, %v179
    %v256 = vmax.f32 %v180, 0.0
    %v257 = vmax.f32 %v181, 0.0
    %v258 = vmax.f32 %v182, 0.0
    %v259 = vmax.f32 %v183, 0.0
    %v260 = vmax.f32 %v184, 0.0
    %v261 = vmax.f32 %v185, 0.0
    %v262 = vmax.f32 %v186, 0.0
    %v263 = vmax.f32 %v187, 0.0
    %v264 = vmax.f32 %v188, 0.0
    %v265 = vmax.f32 %v189, 0.0
    %v266 = vmax.f32 %v190, 0.0
    %v267 = vmax.f32 %v191, 0.0
    %v268 = vmax.f32 %v192, 0.0
    %v269 = vmax.f32 %v193, 0.0
    %v270 = vmax.f32 %v194, 0.0
    %v271 = vmax.f32 %v195, 0.0
    %v272 = vmax.f32 %v196, 0.0
    %v273 = vmax.f32 %v197, 0.0
    %v274 = vmax.f32 %v198, 0.0
    %v275 = vmax.f32 %v199, 0.0
    %v276 = vmax.f32 %v200, 0.0
    %v277 = vmax.f32 %v201, 0.0
    %v278 = vmax.f32 %v202, 0.0
    %v279 = vmax.f32 %v203, 0.0
    %v280 = vmax.f32 %v204, 0.0
    %v281 = vmax.f32 %v205, 0.0
    %v282 = vmax.f32 %v206, 0.0
    %v283 = vmax.f32 %v207, 0.0
    %v284 = vmax.f32 %v208, 0.0
    %v285 = vmax.f32 %v209, 0.0
    %v286 = vmax.f32 %v210, 0.0
    %v287 = vmax.f32 %v211, 0.0
    %v288 = vmax.f32 %v212, 0.0
    %v289 = vmax.f32 %v213, 0.0
    %v290 = vmax.f32 %v214, 0.0
    %v291 = vmax.f32 %v215, 0.0
    %v292 = vmax.f32 %v216, 0.0
    %v293 = vmax.f32 %v217, 0.0
    %v294 = vmax.f32 %v218, 0.0
    %v295 = vmax.f32 %v219, 0.0
    %v296 = vmax.f32 %v220, 0.0
    %v297 = vmax.f32 %v221, 0.0
    %v298 = vmax.f32 %v222, 0.0
    %v299 = vmax.f32 %v223, 0.0
    %v300 = vmax.f32 %v224, 0.0
    %v301 = vmax.f32 %v225, 0.0
    %v302 = vmax.f32 %v226, 0.0
    %v303 = vmax.f32 %v227, 0.0
    %v304 = vmax.f32 %v228, 0.0
    %v305 = vmax.f32 %v229, 0.0
    %v306 = vmax.f32 %v230, 0.0
    %v307 = vmax.f32 %v231, 0.0
    %v308 = vmax.f32 %v232, 0.0
    %v309 = vmax.f32 %v233, 0.0
    %v310 = vmax.f32 %v234, 0.0
    %v311 = vmax.f32 %v235, 0.0
    %v312 = vmax.f32 %v236, 0.0
    %v313 = vmax.f32 %v237, 0.0
    %v314 = vmax.f32 %v238, 0.0
    %v315 = vmax.f32 %v239, 0.0
    %v316 = vmax.f32 %v240, 0.0
    %v317 = vmax.f32 %v241, 0.0
    %v318 = vmax.f32 %v242, 0.0
    %v319 = vmax.f32 %v243, 0.0
    %v320 = vmax.f32 %v244, 0.0
    %v321 = vmax.f32 %v245, 0.0
    %v322 = vmax.f32 %v246, 0.0
    %v323 = vmax.f32 %v247, 0.0
    %v324 = vmax.f32 %v248, 0.0
    %v325 = vmax.f32 %v249, 0.0
    %v326 = vmax.f32 %v250, 0.0
    %v327 = vmax.f32 %v251, 0.0
    %v328 = vmax.f32 %v252, 0.0
    %v329 = vmax.f32 %v253, 0.0
    %v330 = vmax.f32 %v254, 0.0
    %v331 = vmax.f32 %v255, 0.0
    %v332 = vmin.f32 %v256, 1.0
    %v333 = vmin.f32 %v257, 1.0
    %v334 = vmin.f32 %v258, 1.0
    %v335 = vmin.f32 %v259, 1.0
    %v336 = vmin.f32 %v260, 1.0
    %v337 = vmin.f32 %v261, 1.0
    %v338 = vmin.f32 %v262, 1.0
    %v339 = vmin.f32 %v263, 1.0
    %v340 = vmin.f32 %v264, 1.0
    %v341 = vmin.f32 %v265, 1.0
    %v342 = vmin.f32 %v266, 1.0
    %v343 = vmin.f32 %v267, 1.0
    %v344 = vmin.f32 %v268, 1.0
    %v345 = vmin.f32 %v269, 1.0
    %v346 = vmin.f32 %v270, 1.0
    %v347 = vmin.f32 %v271, 1.0
    %v348 = vmin.f32 %v272, 1.0
    %v349 = vmin.f32 %v273, 1.0
    %v350 = vmin.f32 %v274, 1.0
    %v351 = vmin.f32 %v275, 1.0
    %v352 = vmin.f32 %v276, 1.0
    %v353 = vmin.f32 %v277, 1.0
    %v354 = vmin.f32 %v278, 1.0
    %v355 = vmin.f32 %v279, 1.0
    %v356 = vmin.f32 %v280, 1.0
    %v357 = vmin.f32 %v281, 1.0
    %v358 = vmin.f32 %v282, 1.0
    %v359 = vmin.f32 %v283, 1.0
    %v360 = vmin.f32 %v284, 1.0
    %v361 = vmin.f32 %v285, 1.0
    %v362 = vmin.f32 %v286, 1.0
    %v363 = vmin.f32 %v287, 1.0
    %v364 = vmin.f32 %v288, 1.0
    %v365 = vmin.f32 %v289, 1.0
    %v366 = vmin.f32 %v290, 1.0
    %v367 = vmin.f32 %v291, 1.0
    %v368 = vmin.f32 %v292, 1.0
    %v369 = vmin.f32 %v293, 1.0
    %v370 = vmin.f32 %v294, 1.0
    %v371 = vmin.f32 %v295, 1.0
    %v372 = vmin.f32 %v296, 1.0
    %v373 = vmin.f32 %v297, 1.0
    %v374 = vmin.f32 %v298, 1.0
    %v375 = vmin.f32 %v299, 1.0
    %v376 = vmin.f32 %v300, 1.0
    %v377 = vmin.f32 %v301, 1.0
    %v378 = vmin.f32 %v302, 1.0
    %v379 = vmin.f32 %v303, 1.0
    %v380 = vmin.f32 %v304, 1.0
    %v381 = vmin.f32 %v305, 1.0
    %v382 = vmin.f32 %v306, 1.0
    %v383 = vmin.f32 %v307, 1.0
    %v384 = vmin.f32 %v308, 1.0
    %v385 = vmin.f32 %v309, 1.0
    %v386 = vmin.f32 %v310, 1.0
    %v387 = vmin.f32 %v311, 1.0
    %v388 = vmin.f32 %v312, 1.0
    %v389 = vmin.f32 %v313, 1.0
    %v390 = vmin.f32 %v314, 1.0
    %v391 = vmin.f32 %v315, 1.0
    %v392 = vmin.f32 %v316, 1.0
    %v393 = vmin.f32 %v317, 1.0
    %v394 = vmin.f32 %v318, 1.0
    %v395 = vmin.f32 %v319, 1.0
    %v396 = vmin.f32 %v320, 1.0
    %v397 = vmin.f32 %v321, 1.0
    %v398 = vmin.f32 %v322, 1.0
    %v399 = vmin.f32 %v323, 1.0
    %v400 = vmin.f32 %v324, 1.0
    %v401 = vmin.f32 %v325, 1.0
    %v402 = vmin.f32 %v326, 1.0
    %v403 = vmin.f32 %v327, 1.0
    %v404 = vmin.f32 %v328, 1.0
    %v405 = vmin.f32 %v329, 1.0
    %v406 = vmin.f32 %v330, 1.0
    %v407 = vmin.f32 %v331, 1.0
    %408 = vst [vmem:[%s2] sm:$0xff] %v332
    %vm409 = vcmask 187392
    %410 = vst.msk [vmem:[%s2 + $0x8] sm:$0xff] %vm409, %v333
    %411 = vst [vmem:[%s2 + $0x10] sm:$0xff] %v334
    %412 = vst.msk [vmem:[%s2 + $0x18] sm:$0xff] %vm409, %v335
    %413 = vst [vmem:[%s2 + $0x20] sm:$0xff] %v336
    %414 = vst.msk [vmem:[%s2 + $0x28] sm:$0xff] %vm409, %v337
    %415 = vst [vmem:[%s2 + $0x30] sm:$0xff] %v338
    %416 = vst.msk [vmem:[%s2 + $0x38] sm:$0xff] %vm409, %v339
    %417 = vst [vmem:[%s2 + $0x40] sm:$0xff] %v340
    %418 = vst.msk [vmem:[%s2 + $0x48] sm:$0xff] %vm409, %v341
    %419 = vst [vmem:[%s2 + $0x50] sm:$0xff] %v342
    %420 = vst.msk [vmem:[%s2 + $0x58] sm:$0xff] %vm409, %v343
    %421 = vst [vmem:[%s2 + $0x60] sm:$0xff] %v344
    %422 = vst.msk [vmem:[%s2 + $0x68] sm:$0xff] %vm409, %v345
    %423 = vst [vmem:[%s2 + $0x70] sm:$0xff] %v346
    %424 = vst.msk [vmem:[%s2 + $0x78] sm:$0xff] %vm409, %v347
    %425 = vst [vmem:[%s2 + $0x80] sm:$0xff] %v348
    %426 = vst.msk [vmem:[%s2 + $0x88] sm:$0xff] %vm409, %v349
    %427 = vst [vmem:[%s2 + $0x90] sm:$0xff] %v350
    %428 = vst.msk [vmem:[%s2 + $0x98] sm:$0xff] %vm409, %v351
    %429 = vst [vmem:[%s2 + $0xa0] sm:$0xff] %v352
    %430 = vst.msk [vmem:[%s2 + $0xa8] sm:$0xff] %vm409, %v353
    %431 = vst [vmem:[%s2 + $0xb0] sm:$0xff] %v354
    %432 = vst.msk [vmem:[%s2 + $0xb8] sm:$0xff] %vm409, %v355
    %433 = vst [vmem:[%s2 + $0xc0] sm:$0xff] %v356
    %434 = vst.msk [vmem:[%s2 + $0xc8] sm:$0xff] %vm409, %v357
    %435 = vst [vmem:[%s2 + $0xd0] sm:$0xff] %v358
    %436 = vst.msk [vmem:[%s2 + $0xd8] sm:$0xff] %vm409, %v359
    %437 = vst [vmem:[%s2 + $0xe0] sm:$0xff] %v360
    %438 = vst.msk [vmem:[%s2 + $0xe8] sm:$0xff] %vm409, %v361
    %439 = vst [vmem:[%s2 + $0xf0] sm:$0xff] %v362
    %440 = vst.msk [vmem:[%s2 + $0xf8] sm:$0xff] %vm409, %v363
    %441 = vst [vmem:[%s2 + $0x100] sm:$0xff] %v364
    %442 = vst.msk [vmem:[%s2 + $0x108] sm:$0xff] %vm409, %v365
    %443 = vst [vmem:[%s2 + $0x110] sm:$0xff] %v366
    %444 = vst.msk [vmem:[%s2 + $0x118] sm:$0xff] %vm409, %v367
    %445 = vst [vmem:[%s2 + $0x120] sm:$0xff] %v368
    %446 = vst.msk [vmem:[%s2 + $0x128] sm:$0xff] %vm409, %v369
    %447 = vst [vmem:[%s2 + $0x130] sm:$0xff] %v370
    %448 = vst.msk [vmem:[%s2 + $0x138] sm:$0xff] %vm409, %v371
    %449 = vst [vmem:[%s2 + $0x140] sm:$0xff] %v372
    %450 = vst.msk [vmem:[%s2 + $0x148] sm:$0xff] %vm409, %v373
    %451 = vst [vmem:[%s2 + $0x150] sm:$0xff] %v374
    %452 = vst.msk [vmem:[%s2 + $0x158] sm:$0xff] %vm409, %v375
    %453 = vst [vmem:[%s2 + $0x160] sm:$0xff] %v376
    %454 = vst.msk [vmem:[%s2 + $0x168] sm:$0xff] %vm409, %v377
    %455 = vst [vmem:[%s2 + $0x170] sm:$0xff] %v378
    %456 = vst.msk [vmem:[%s2 + $0x178] sm:$0xff] %vm409, %v379
    %457 = vst [vmem:[%s2 + $0x180] sm:$0xff] %v380
    %458 = vst.msk [vmem:[%s2 + $0x188] sm:$0xff] %vm409, %v381
    %459 = vst [vmem:[%s2 + $0x190] sm:$0xff] %v382
    %460 = vst.msk [vmem:[%s2 + $0x198] sm:$0xff] %vm409, %v383
    %461 = vst [vmem:[%s2 + $0x1a0] sm:$0xff] %v384
    %462 = vst.msk [vmem:[%s2 + $0x1a8] sm:$0xff] %vm409, %v385
    %463 = vst [vmem:[%s2 + $0x1b0] sm:$0xff] %v386
    %464 = vst.msk [vmem:[%s2 + $0x1b8] sm:$0xff] %vm409, %v387
    %465 = vst [vmem:[%s2 + $0x1c0] sm:$0xff] %v388
    %466 = vst.msk [vmem:[%s2 + $0x1c8] sm:$0xff] %vm409, %v389
    %467 = vst [vmem:[%s2 + $0x1d0] sm:$0xff] %v390
    %468 = vst.msk [vmem:[%s2 + $0x1d8] sm:$0xff] %vm409, %v391
    %469 = vst [vmem:[%s2 + $0x1e0] sm:$0xff] %v392
    %470 = vst.msk [vmem:[%s2 + $0x1e8] sm:$0xff] %vm409, %v393
    %471 = vst [vmem:[%s2 + $0x1f0] sm:$0xff] %v394
    %472 = vst.msk [vmem:[%s2 + $0x1f8] sm:$0xff] %vm409, %v395
    %473 = vst [vmem:[%s2 + $0x200] sm:$0xff] %v396
    %474 = vst.msk [vmem:[%s2 + $0x208] sm:$0xff] %vm409, %v397
    %475 = vst [vmem:[%s2 + $0x210] sm:$0xff] %v398
    %476 = vst.msk [vmem:[%s2 + $0x218] sm:$0xff] %vm409, %v399
    %477 = vst [vmem:[%s2 + $0x220] sm:$0xff] %v400
    %478 = vst.msk [vmem:[%s2 + $0x228] sm:$0xff] %vm409, %v401
    %479 = vst [vmem:[%s2 + $0x230] sm:$0xff] %v402
    %480 = vst.msk [vmem:[%s2 + $0x238] sm:$0xff] %vm409, %v403
    %481 = vst [vmem:[%s2 + $0x240] sm:$0xff] %v404
    %482 = vst.msk [vmem:[%s2 + $0x248] sm:$0xff] %vm409, %v405
    %483 = vst [vmem:[%s2 + $0x250] sm:$0xf] %v406
    %vm484 = vcmask 183296
    %485 = vst.msk [vmem:[%s2 + $0x258] sm:$0xf] %vm484, %v407
    // Predicated region
    $region14: #{tpu_custom_call.1} parent=1 // pred_check
      _
    $region15: #{tpu_custom_call.1} parent=1 // pred_check_branch
      %487 = sbr.rel (0) target = $region17
    $region16: #{tpu_custom_call.1} parent=1 // pred_region
      _
    $region17: #{tpu_custom_call.1} parent=1 // pred_fallthru
      _
    // Predicated region
    $region18: #{tpu_custom_call.1} parent=1 // pred_check
      _
    $region19: #{tpu_custom_call.1} parent=1 // pred_check_branch
      %489 = sbr.rel (0) target = $region21
    $region20: #{tpu_custom_call.1} parent=1 // pred_region
      _
    $region21: #{tpu_custom_call.1} parent=1 // pred_fallthru
      _
    %490 = vsyncpa [#allocation3], 1

</llo_original>
